<compile_context>
chip_gen: v7x
topology: tpu7x:2x2x1
jax: 0.10.0
libtpu: 0.0.40
codegen_flags: <defaults>
</compile_context>

<pallas_src>
import functools

import jax
import jax.numpy as jnp
from jax import lax
from jax.experimental import pallas as pl
from jax.experimental.pallas import tpu as pltpu


def _tpu_params():
    """(vmem_capacity_bytes, num_tensorcores) with conservative fallbacks."""
    vmem_cap = 64 * 1024 * 1024          # v7x per-TC capacity (smallest generation)
    num_cores = 1                        # v5e / v6e have one TensorCore per chip
    try:
        info = pltpu.get_tpu_info()
        cap = getattr(info, "vmem_capacity_bytes", None)
        if cap is not None:
            cap = int(cap)
            if 16 * 1024 * 1024 <= cap <= 512 * 1024 * 1024:
                vmem_cap = cap
        for name in ("num_tensorcores", "tensorcore_count", "num_cores", "core_count"):
            val = getattr(info, name, None)
            if val is None:
                continue
            try:
                val = int(val)
            except Exception:
                continue
            if 1 <= val <= 16:
                num_cores = val
                break
    except Exception:
        pass
    return vmem_cap, num_cores


def _wmse_kernel(pred_ref, gt_ref, w_ref, out_ref, *,
                 tm, group, t_per_core, n_rows, w_is_resident):
    # pred_ref, gt_ref: (TM, HW) row tile (input dtype, cast to f32 in-kernel)
    # w_ref:            resident (R_w, 1) f32 column, or (TM, 1) block
    # out_ref:          (group, HW) resident per-core partial-sum accumulator
    c = pl.program_id(0)
    t = pl.program_id(1)

    @pl.when(t == 0)
    def _():
        out_ref[...] = jnp.zeros_like(out_ref)

    # Global row index of this tile's first row (unclamped -> drives tail masking,
    # including steps whose block index was clamped onto the last valid block).
    row_base = (c * t_per_core + t) * tm

    def step(k, carry):
        r0 = pl.multiple_of(k * group, group)          # local row offset in tile
        grow = row_base + r0                           # global row offset

        p = jax.nn.sigmoid(pred_ref[pl.ds(r0, group), :].astype(jnp.float32))
        g = gt_ref[pl.ds(r0, group), :].astype(jnp.float32)

        w_start = pl.multiple_of(grow if w_is_resident else r0, group)
        wv = w_ref[pl.ds(w_start, group), :]           # (group, 1) f32

        d = (p - g) * wv
        rows = grow + lax.broadcasted_iota(jnp.int32, (group, 1), 0)
        sq = jnp.where(rows < n_rows, d * d, 0.0)      # zero ragged / padded rows
        out_ref[...] += sq
        return carry

    lax.fori_loop(0, tm // group, step, 0)


def weighted_mse_loss(output, target, target_weight):
    """output, target: (B, J, H, W); target_weight: (B, J, 1). Returns f32 scalar."""
    B, J, H, W = output.shape
    HW = H * W
    R = B * J

    # Contiguous (free) reshapes only -- no transposes, no padding of pred/gt.
    pred = output.reshape(R, HW)
    gt = target.reshape(R, HW)
    w = target_weight.reshape(R, 1).astype(jnp.float32)

    itemsize = int(jnp.dtype(output.dtype).itemsize)
    group = max(8, 32 // max(itemsize, 1))       # 8 rows/vreg f32, 16 bf16, 32 int8
    align = group

    hw_pad = ((HW + 127) // 128) * 128           # lane-padded VMEM width
    row_bytes = HW * itemsize

    vmem_cap, num_cores = _tpu_params()
    vmem_limit = int(min(vmem_cap * 3 // 4, 100 * 1024 * 1024))

    rows_aligned = ((R + align - 1) // align) * align

    # --- Tile sizing: by bytes (~2 MiB per input tile), capped by VMEM budget ---
    target_tile_bytes = 2 * 1024 * 1024
    # 2 inputs x 2 pipeline buffers (+ worst-case lane-padded blocked-w buffers).
    per_row_tile_bytes = 4 * itemsize * hw_pad + 2 * 512
    reserved = 4 * 1024 * 1024 + 2 * group * hw_pad * 4   # headroom + resident out
    tile_budget = max(vmem_limit - reserved, per_row_tile_bytes * align)

    tm_cap = max(align, (tile_budget // per_row_tile_bytes) // align * align)
    tm_target = max(align, (target_tile_bytes // max(row_bytes, 1)) // align * align)
    TM = max(align, min(tm_target, tm_cap, rows_aligned) // align * align)

    tiles = -(-R // TM)
    NC = num_cores if (num_cores > 1 and tiles >= num_cores) else 1
    T = -(-tiles // NC)

    # --- Weight column: keep it fully resident in VMEM when small (one DMA) ---
    R_w = NC * T * TM
    w_resident_bytes = R_w * 512                 # (R_w,1) f32 lane-pads to 512 B/row
    w_is_resident = (
        w_resident_bytes <= 8 * 1024 * 1024
        and 4 * TM * hw_pad * itemsize + w_resident_bytes + reserved <= vmem_limit
    )
    if w_is_resident and R_w != R:
        # Tiny pad (zero weight -> zero contribution); pred/gt are NOT padded.
        w = jnp.pad(w, ((0, R_w - R), (0, 0)))

    # --- BlockSpecs ---
    last_block = tiles - 1
    if NC * T != tiles:
        def _tile_index(c, t):
            # Clamp fully-out-of-range steps onto the last valid block; the
            # in-kernel row mask zeroes their contribution (no double count).
            return (jnp.minimum(c * T + t, last_block), 0)
    else:
        def _tile_index(c, t):
            return (c * T + t, 0)

    in_specs = [
        pl.BlockSpec((TM, HW), _tile_index),
        pl.BlockSpec((TM, HW), _tile_index),
        (pl.BlockSpec((w.shape[0], 1), lambda c, t: (0, 0)) if w_is_resident
         else pl.BlockSpec((TM, 1), _tile_index)),
    ]
    out_specs = pl.BlockSpec((None, group, HW), lambda c, t: (c, 0, 0))

    sem0 = pltpu.CORE_PARALLEL if NC > 1 else pltpu.ARBITRARY
    kernel = functools.partial(
        _wmse_kernel, tm=TM, group=group, t_per_core=T, n_rows=R,
        w_is_resident=w_is_resident)

    cost = pl.CostEstimate(
        flops=int(6 * R * HW),
        transcendentals=int(R * HW),
        bytes_accessed=int(2 * R * HW * itemsize + 4 * R + NC * group * HW * 4),
    )

    partials = pl.pallas_call(
        kernel,
        out_shape=jax.ShapeDtypeStruct((NC, group, HW), jnp.float32),
        grid=(NC, T),
        in_specs=in_specs,
        out_specs=out_specs,
        compiler_params=pltpu.CompilerParams(
            dimension_semantics=(sem0, pltpu.ARBITRARY),
            vmem_limit_bytes=vmem_limit,
        ),
        cost_estimate=cost,
    )(pred, gt, w)

    # One small cross-lane/core reduction outside the kernel.
    total = jnp.sum(partials, dtype=jnp.float32)
    # Each per-joint MSE is a mean over B*HW; the final loss divides by J.
    return (total / (J * B * HW)).astype(jnp.float32)


def _reference(output, target, target_weight):
    B, J, H, W = output.shape
    pred = output.reshape(B, J, -1)
    gt = target.reshape(B, J, -1)
    loss = 0.0
    for idx in range(J):
        hp = jax.nn.sigmoid(pred[:, idx])                 # (B, HW)
        hg = gt[:, idx]                                   # (B, HW)
        wt = target_weight[:, idx]                        # (B, 1)
        loss += jnp.mean((hp * wt - hg * wt) ** 2)
    return loss / J


if __name__ == "__main__":
    key = jax.random.PRNGKey(0)
    k1, k2, k3 = jax.random.split(key, 3)

    B, J, H, W = 2, 4, 16, 16
    output = jax.random.normal(k1, (B, J, H, W), dtype=jnp.float32)
    target = jax.random.uniform(k2, (B, J, H, W), dtype=jnp.float32)
    target_weight = jax.random.uniform(k3, (B, J, 1), dtype=jnp.float32)

    loss = jax.block_until_ready(weighted_mse_loss(output, target, target_weight))
    ref = jax.block_until_ready(_reference(output, target, target_weight))

    assert jnp.allclose(loss, ref, rtol=1e-5, atol=1e-6), (loss, ref)
    print("KERNEL_OK")
</pallas_src>

<mosaic_0001>
module attributes {stable_mosaic.version = 11 : i64} {
  func.func @_wmse_kernel(%arg0: i32, %arg1: i32, %arg2: memref<8x256xf32, #tpu.memory_space<vmem>>, %arg3: memref<8x256xf32, #tpu.memory_space<vmem>>, %arg4: memref<8x1xf32, #tpu.memory_space<vmem>>, %arg5: memref<1x8x256xf32, #tpu.memory_space<vmem>>) attributes {dimension_semantics = [#tpu.dimension_semantics<arbitrary>, #tpu.dimension_semantics<arbitrary>], iteration_bounds = array<i64: 1, 1>, scalar_prefetch = 0 : i64, scratch_operands = 0 : i64, tpu.core_type = #tpu.core_type<tc>, window_params = [{transform_indices = @transform_0, window_bounds = array<i64: 8, 256>}, {transform_indices = @transform_1, window_bounds = array<i64: 8, 256>}, {pipeline_mode = #tpu.pipeline_mode<synchronous>, transform_indices = @transform_2, window_bounds = array<i64: 8, 1>}, {transform_indices = @transform_3, window_bounds = array<i64: 1, 8, 256>}]} {
    %c0_i32 = arith.constant 0 : i32
    %0 = arith.cmpi eq, %arg1, %c0_i32 : i32
    %1 = arith.extui %0 : i1 to i32
    %c0_i32_0 = arith.constant 0 : i32
    %2 = arith.cmpi ne, %1, %c0_i32_0 : i32
    scf.if %2 {
      %cst_14 = arith.constant 0.000000e+00 : f32
      %40 = vector.broadcast %cst_14 : f32 to vector<8x256xf32>
      %c0_15 = arith.constant 0 : index
      %c0_16 = arith.constant 0 : index
      %c0_17 = arith.constant 0 : index
      %41 = vector.load %arg5[%c0_15, %c0_16, %c0_17] : memref<1x8x256xf32, #tpu.memory_space<vmem>>, vector<1x8x256xf32>
      %42 = vector.shape_cast %41 : vector<1x8x256xf32> to vector<8x256xf32>
      %43 = vector.shape_cast %40 : vector<8x256xf32> to vector<1x8x256xf32>
      tpu.vector_store %arg5[%c0_15, %c0_16, %c0_17], %43 {strides = array<i32>} : memref<1x8x256xf32, #tpu.memory_space<vmem>>, vector<1x8x256xf32>,
    } else {
    }
    %c1_i32 = arith.constant 1 : i32
    %3 = arith.muli %arg0, %c1_i32 : i32
    %4 = arith.addi %3, %arg1 : i32
    %c8_i32 = arith.constant 8 : i32
    %5 = arith.muli %4, %c8_i32 : i32
    %c0_i32_1 = arith.constant 0 : i32
    %c8_i32_2 = arith.constant 8 : i32
    %6 = arith.muli %c0_i32_1, %c8_i32_2 : i32
    %7 = tpu.assume_multiple %6, 8 : i32
    %8 = arith.addi %5, %7 : i32
    %9 = arith.index_cast %7 : i32 to index
    %c0 = arith.constant 0 : index
    %10 = vector.load %arg2[%9, %c0] : memref<8x256xf32, #tpu.memory_space<vmem>>, vector<8x256xf32>
    %11 = arith.negf %10 : vector<8x256xf32>
    %12 = math.exp %11 : vector<8x256xf32>
    %cst = arith.constant 1.000000e+00 : f32
    %13 = vector.broadcast %cst : f32 to vector<8x256xf32>
    %14 = arith.addf %13, %12 : vector<8x256xf32>
    %15 = arith.divf %13, %14 : vector<8x256xf32>
    %16 = arith.index_cast %7 : i32 to index
    %c0_3 = arith.constant 0 : index
    %17 = vector.load %arg3[%16, %c0_3] : memref<8x256xf32, #tpu.memory_space<vmem>>, vector<8x256xf32>
    %18 = tpu.assume_multiple %8, 8 : i32
    %19 = arith.index_cast %18 : i32 to index
    %c0_4 = arith.constant 0 : index
    %20 = vector.load %arg4[%19, %c0_4] : memref<8x1xf32, #tpu.memory_space<vmem>>, vector<8x1xf32>
    %21 = arith.subf %15, %17 : vector<8x256xf32>
    %22 = vector.broadcast %20 : vector<8x1xf32> to vector<8x256xf32>
    %23 = arith.mulf %21, %22 : vector<8x256xf32>
    %24 = tpu.iota {dimensions = array<i32: 0>} : vector<8x1xi32>
    %25 = vector.broadcast %8 : i32 to vector<8x1xi32>
    %26 = arith.addi %25, %24 : vector<8x1xi32>
    %c8_i32_5 = arith.constant 8 : i32
    %27 = vector.broadcast %c8_i32_5 : i32 to vector<8x1xi32>
    %28 = arith.cmpi slt, %26, %27 : vector<8x1xi32>
    %29 = arith.mulf %23, %23 : vector<8x256xf32>
    %cst_6 = arith.constant 0.000000e+00 : f32
    %30 = vector.shape_cast %28 : vector<8x1xi1> to vector<8x1xi1>
    %31 = vector.broadcast %30 : vector<8x1xi1> to vector<8x256xi1>
    %32 = vector.broadcast %cst_6 : f32 to vector<8x256xf32>
    %33 = arith.select %31, %29, %32 : vector<8x256xi1>, vector<8x256xf32>
    %c0_7 = arith.constant 0 : index
    %c0_8 = arith.constant 0 : index
    %c0_9 = arith.constant 0 : index
    %34 = vector.load %arg5[%c0_7, %c0_8, %c0_9] : memref<1x8x256xf32, #tpu.memory_space<vmem>>, vector<1x8x256xf32>
    %35 = vector.shape_cast %34 : vector<1x8x256xf32> to vector<8x256xf32>
    %36 = arith.addf %35, %33 : vector<8x256xf32>
    %c0_10 = arith.constant 0 : index
    %c0_11 = arith.constant 0 : index
    %c0_12 = arith.constant 0 : index
    %37 = vector.load %arg5[%c0_10, %c0_11, %c0_12] : memref<1x8x256xf32, #tpu.memory_space<vmem>>, vector<1x8x256xf32>
    %38 = vector.shape_cast %37 : vector<1x8x256xf32> to vector<8x256xf32>
    %39 = vector.shape_cast %36 : vector<8x256xf32> to vector<1x8x256xf32>
    tpu.vector_store %arg5[%c0_10, %c0_11, %c0_12], %39 {strides = array<i32>} : memref<1x8x256xf32, #tpu.memory_space<vmem>>, vector<1x8x256xf32>,
    %c1_i32_13 = arith.constant 1 : i32
    return
  }
  func.func @transform_0(%arg0: i32, %arg1: i32) -> (i32, i32) {
    %c1_i32 = arith.constant 1 : i32
    %0 = arith.muli %arg0, %c1_i32 : i32
    %1 = arith.addi %0, %arg1 : i32
    %c0_i32 = arith.constant 0 : i32
    %c0_i32_0 = arith.constant 0 : i32
    return %1, %c0_i32 : i32, i32
  }
  func.func @transform_1(%arg0: i32, %arg1: i32) -> (i32, i32) {
    %c1_i32 = arith.constant 1 : i32
    %0 = arith.muli %arg0, %c1_i32 : i32
    %1 = arith.addi %0, %arg1 : i32
    %c0_i32 = arith.constant 0 : i32
    %c0_i32_0 = arith.constant 0 : i32
    return %1, %c0_i32 : i32, i32
  }
  func.func @transform_2(%arg0: i32, %arg1: i32) -> (i32, i32) {
    %c0_i32 = arith.constant 0 : i32
    %c0_i32_0 = arith.constant 0 : i32
    %c0_i32_1 = arith.constant 0 : i32
    return %c0_i32, %c0_i32_0 : i32, i32
  }
  func.func @transform_3(%arg0: i32, %arg1: i32) -> (i32, i32, i32) {
    %c0_i32 = arith.constant 0 : i32
    %c0_i32_0 = arith.constant 0 : i32
    %c0_i32_1 = arith.constant 0 : i32
    return %arg0, %c0_i32, %c0_i32_0 : i32, i32, i32
  }
}

</mosaic_0001>

<llo_original>
// kernel: tpu_custom_call.1
$region0: #{tpu_custom_call.1}
  #allocation0 [shape = 'u32[]', space=smem, size = 0x4, offset = 0x4, fixed_abs, tag = 'smem constant byte address 0x4 - core index']
  #allocation1 [shape = 'u32[144,128]{1,0:T(1,128)}', space=vmem, size = 0x12000, scoped, tag = 'internal scratch']
  %s0 = inlined_call_operand.hbm [shape: f32[8,256], index: 0, kind: input, shape index: {}]
  %s1 = inlined_call_operand.hbm [shape: f32[8,256], index: 1, kind: input, shape index: {}]
  %s2 = inlined_call_operand.vmem [shape: f32[8,1], index: 2, kind: input, shape index: {}]
  %s3 = inlined_call_operand.hbm [shape: f32[1,8,256], index: 3, kind: output, shape index: {}]
  %s4 = sld [smem:[#allocation0]]
  $region34: #{tpu_custom_call.1} parent=0
    _
  %s6 = ssub.s32 1, %s4
  %s7 = scalar_select 0, %s6, %s4
  $region1: #{tpu_custom_call.1} parent=0
    #allocation2 [shape = 'u8[8192]{0}', space=vmem, size = 0x2000, scoped, tag = 'input window, operand 0, single buffered']
    #allocation3 [shape = 's32[1]{0}', space=sflag, size = 0x4, scoped, tag = 'scoped memory for tpu_custom_call.1']
    #allocation4 [shape = 's32[1]{0}', space=sflag, size = 0x4, scoped, tag = 'scoped memory for tpu_custom_call.1']
    #allocation5 [shape = 'u8[8192]{0}', space=vmem, size = 0x2000, scoped, tag = 'input window, operand 1, single buffered']
    #allocation6 [shape = 's32[1]{0}', space=sflag, size = 0x4, scoped, tag = 'scoped memory for tpu_custom_call.1']
    #allocation7 [shape = 'u8[8192]{0}', space=vmem, size = 0x2000, scoped, tag = 'output window, operand 0, single buffered']
    %8 = vsyncpa [#allocation3], 0
    %9 = vsyncpa [#allocation6], 0
    %10 = vsyncpa [#allocation4], 0
    // Predicated region
    $region2: #{tpu_custom_call.1} parent=1 // pred_check
      _
    $region3: #{tpu_custom_call.1} parent=1 // pred_check_branch
      %12 = sbr.rel (0) target = $region5
    $region4: #{tpu_custom_call.1} parent=1 // pred_region
      %s13 = sadd.s32 0, 0
      %s15 = ssub.s32 256, 256
      %16 = vsyncadd [#allocation3], %s15
      %s17 = smul.addr %s13, 2
      %s18 = smul.addr %s17, 128
      %s19 = scalar_lea.hbm %s0, %s18
      %s21 = sshll.u32 [#allocation2], 4
      %s22 = int_to_ptr.vmem [resolvable:$true] %s21
      %24 = dma.hbm_to_vmem [thread:$0]  %s19, 256, %s22, [#allocation3]
    $region5: #{tpu_custom_call.1} parent=1 // pred_fallthru
      _
    // Predicated region
    $region6: #{tpu_custom_call.1} parent=1 // pred_check
      _
    $region7: #{tpu_custom_call.1} parent=1 // pred_check_branch
      %26 = sbr.rel (0) target = $region9
    $region8: #{tpu_custom_call.1} parent=1 // pred_region
      %s27 = sadd.s32 0, 0
      %s29 = ssub.s32 256, 256
      %30 = vsyncadd [#allocation6], %s29
      %s31 = smul.addr %s27, 2
      %s32 = smul.addr %s31, 128
      %s33 = scalar_lea.hbm %s1, %s32
      %s35 = sshll.u32 [#allocation5], 4
      %s36 = int_to_ptr.vmem [resolvable:$true] %s35
      %38 = dma.hbm_to_vmem [thread:$0]  %s33, 256, %s36, [#allocation6]
    $region9: #{tpu_custom_call.1} parent=1 // pred_fallthru
      _
    // Predicated region
    $region10: #{tpu_custom_call.1} parent=1 // pred_check
      _
    $region11: #{tpu_custom_call.1} parent=1 // pred_check_branch
      %40 = sbr.rel (0) target = $region13
    $region12: #{tpu_custom_call.1} parent=1 // pred_region
      _
    $region13: #{tpu_custom_call.1} parent=1 // pred_fallthru
      _
    // Predicated region
    $region14: #{tpu_custom_call.1} parent=1 // pred_check
      _
    $region15: #{tpu_custom_call.1} parent=1 // pred_check_branch
      %42 = sbr.rel (0) target = $region17
    $region16: #{tpu_custom_call.1} parent=1 // pred_region
      %43 = dma.done [#allocation3], 256
    $region17: #{tpu_custom_call.1} parent=1 // pred_fallthru
      _
    // Predicated region
    $region18: #{tpu_custom_call.1} parent=1 // pred_check
      _
    $region19: #{tpu_custom_call.1} parent=1 // pred_check_branch
      %45 = sbr.rel (0) target = $region21
    $region20: #{tpu_custom_call.1} parent=1 // pred_region
      %46 = dma.done [#allocation6], 256
    $region21: #{tpu_custom_call.1} parent=1 // pred_fallthru
      _
    %s47 = sadd.s32 0, 0
    %s48 = sadd.s32 0, 0
    %p49 = scmp.eq.s32.totalorder 0, 0
    // Predicated region
    $region22: #{tpu_custom_call.1} parent=1 // pred_check
      %p50 = pneg %p49
    $region23: #{tpu_custom_call.1} parent=1 // pred_check_branch
      %52 = sbr.rel (%p50) target = $region25
    $region24: #{tpu_custom_call.1} parent=1 // pred_region
      %53 = vst [vmem:[#allocation7] sm:$0xff] 0.0
      %54 = vst [vmem:[#allocation7 + $0x8] sm:$0xff] 0.0
    $region25: #{tpu_custom_call.1} parent=1 // pred_fallthru
      _
    %s55 = sadd.s32 0, 0
    %s56 = smul.u32 %s55, 8
    %s57 = sadd.s32 %s56, 0
    %s58 = smul.u32 0, 2
    %s59 = smul.addr %s58, 8
    %s60 = scalar_lea.vmem [#allocation2], %s59
    %v61 = vld [vmem:[%s60] sm:$0xff]
    %v62 = vld [vmem:[%s60 + $0x8] sm:$0xff]
    %v63 = vxor.u32 %v61, 2147483648
    %v64 = vxor.u32 %v62, 2147483648
    %v65 = vmul.f32 %v63, 1.442695
    %v66 = vpow.pop %v65
    %v67 = vmul.f32 %v64, 1.442695
    %v68 = vpow.pop %v67
    %v69 = vadd.f32 %v66, 1.0
    %v70 = vadd.f32 %v68, 1.0
    %v71 = vrcp.pop %v69
    %v72 = vmul.f32 1.0, %v71
    %v73 = vrcp.pop %v70
    %v74 = vmul.f32 1.0, %v73
    %s75 = smul.addr %s58, 8
    %s76 = scalar_lea.vmem [#allocation5], %s75
    %v77 = vld [vmem:[%s76] sm:$0xff]
    %v78 = vld [vmem:[%s76 + $0x8] sm:$0xff]
    %s79 = scalar_lea.vmem %s2, %s57
    %v80 = vld [vmem:[%s79] sm:$0xff]
    %v81 = vsub.f32 %v72, %v77
    %v82 = vsub.f32 %v74, %v78
    %84 = vset.pattern.permute.xlu0 0
    %85 = vperm.xlu0 %84, %v80
    %v86 = vpop.permute.xlu0 %85
    %v88 = vmul.f32 %v81, %v86
    %v89 = vmul.f32 %v82, %v86
    %v90 = vlaneseq
    %v91 = vshrl.u32 %v90, 7
    %v92 = vstv %s57
    %v93 = vadd.s32 %v92, %v91
    %vm94 = vcmp.lt.s32.totalorder %v93, 8
    %v95 = vmul.f32 %v88, %v88
    %v96 = vmul.f32 %v89, %v89
    %v97 = vsel %vm94, 1, 0
    %vm98 = vcmp.eq.s32.totalorder %v97, 1
    %v99 = vsel %vm98, %v95, 0.0
    %v100 = vsel %vm98, %v96, 0.0
    %v101 = vld [vmem:[#allocation7] sm:$0xff]
    %v102 = vld [vmem:[#allocation7 + $0x8] sm:$0xff]
    %v103 = vadd.f32 %v101, %v99
    %v104 = vadd.f32 %v102, %v100
    %105 = vst [vmem:[#allocation7] sm:$0xff] %v103
    %106 = vst [vmem:[#allocation7 + $0x8] sm:$0xff] %v104
    // Predicated region
    $region26: #{tpu_custom_call.1} parent=1 // pred_check
      _
    $region27: #{tpu_custom_call.1} parent=1 // pred_check_branch
      %108 = sbr.rel (0) target = $region29
    $region28: #{tpu_custom_call.1} parent=1 // pred_region
      %s110 = ssub.s32 256, 256
      %111 = vsyncadd [#allocation4], %s110
      %s113 = sshll.u32 [#allocation7], 4
      %s114 = int_to_ptr.vmem [resolvable:$true] %s113
      %116 = dma.vmem_to_hbm [thread:$0]  %s114, 256, %s3, [#allocation4]
    $region29: #{tpu_custom_call.1} parent=1 // pred_fallthru
      _
    // Predicated region
    $region30: #{tpu_custom_call.1} parent=1 // pred_check
      _
    $region31: #{tpu_custom_call.1} parent=1 // pred_check_branch
      %118 = sbr.rel (0) target = $region33
    $region32: #{tpu_custom_call.1} parent=1 // pred_region
      %119 = dma.done [#allocation4], 256
    $region33: #{tpu_custom_call.1} parent=1 // pred_fallthru
      _
    %120 = vsyncpa [#allocation3], 1
    %121 = vsyncpa [#allocation6], 1
    %122 = vsyncpa [#allocation4], 1

</llo_original>
